<compile_context>
chip_gen: v5e
topology: v5e:2x2
jax: 0.10.0
libtpu: 0.0.40
codegen_flags: <defaults>
</compile_context>

<pallas_src>
import functools

import numpy as np

import jax
import jax.numpy as jnp
from jax.experimental import pallas as pl
from jax.experimental.pallas import tpu as pltpu


def _make_coupling_kernel(reverse: bool):
    """Kernel factory; `reverse` is a static (trace-time) choice."""

    def kernel(z_ref, ldj_ref, w1_ref, b1_ref, w2_ref, b2_ref,
               pexp_ref, sfac_ref, isfac_ref, mask_ref,
               z_out_ref, ldj_out_ref):
        D = z_ref.shape[1]

        # (TB, D) -> (D, TB): put the batch on the 128-wide lane axis so every
        # VPU/EUP op and the MXU RHS are lane-dense (D=16 would waste 7/8 of
        # each vreg otherwise).  The XLU transpose slot is idle here.
        zT = jnp.transpose(z_ref[...])                       # (D, TB) f32

        # Layer 1: mask is already folded into the weights (w1m = w1 * mask).
        h = jnp.dot(w1_ref[...], zT,
                    preferred_element_type=jnp.float32) + b1_ref[...]
        h = jnp.maximum(h, 0.0)                              # (H, TB)

        # Fused layer 2 -- a single MXU op produces:
        #   rows [0, D)      : t for all channels, with (1 - mask) folded into
        #                      the weights/bias -> exactly 0 on identity rows
        #   rows [D, D + Dt) : raw s for the *transformed* channels only
        st = jnp.dot(w2_ref[...], h,
                     preferred_element_type=jnp.float32) + b2_ref[...]
        t_full = st[:D, :]                                   # (D,  TB)
        s_raw = st[D:, :]                                    # (Dt, TB)

        # s = tanh(s / s_fac) * s_fac, transformed channels only -> half the
        # EUP (tanh/exp) work.  s_fac and 1/s_fac are exact host precomputes.
        s = jnp.tanh(s_raw * isfac_ref[...]) * sfac_ref[...]
        s_sum = jnp.sum(s, axis=0, keepdims=True)            # (1, TB)

        e = jnp.exp(-s) if reverse else jnp.exp(s)           # (Dt, TB)
        # Scatter exp(+/-s) back to all D channels with a tiny 0/1 matrix;
        # identity rows get 0 + mask(=1) = 1 == exp(0).
        e_full = jnp.dot(pexp_ref[...], e,
                         preferred_element_type=jnp.float32) + mask_ref[...]

        if not reverse:
            z_new_T = (zT + t_full) * e_full
            ldj_out_ref[...] = ldj_ref[...] + s_sum
        else:
            z_new_T = zT * e_full - t_full
            ldj_out_ref[...] = ldj_ref[...] - s_sum

        # Back to the caller's natural (B, D) layout.
        z_out_ref[...] = jnp.transpose(z_new_T)              # (TB, D)

    return kernel


def _round_up(x, m):
    return (x + m - 1) // m * m


def _pick_batch_tile(b_pad: int, block_b: int) -> int:
    """Largest multiple of 128 that divides b_pad and is <= min(block_b, 8192)."""
    cap = max(128, min((block_b // 128) * 128, 8192, b_pad))
    tb = 128
    for cand in range(cap, 0, -128):
        if b_pad % cand == 0:
            tb = cand
            break
    # Prefer >= 2 grid steps so a v7x megacore can split the batch axis.
    if b_pad // tb == 1 and b_pad >= 256 and b_pad % 256 == 0:
        tb = b_pad // 2
    return tb


def prepare_coupling_params(mask, scaling_factor, w1, b1, w2, b2):
    """One-time (per layer) host-side parameter preparation.

    mask must be a concrete array (it is a fixed buffer of the layer).
    Returns (w1mT, b1c, w2stT, b2st, pexp, sfac, isfac, mask_col).
    """
    mask_np = np.asarray(mask, dtype=np.float32)
    D = int(mask_np.shape[0])
    idx_tr = np.nonzero(mask_np == 0.0)[0]            # transformed channels
    Dt = int(idx_tr.shape[0])
    assert Dt >= 1, "mask must mark at least one channel as transformed (mask == 0)"

    w1_np = np.asarray(w1, dtype=np.float32)          # (D, H)
    b1_np = np.asarray(b1, dtype=np.float32)          # (H,)
    w2_np = np.asarray(w2, dtype=np.float32)          # (H, 2D)
    b2_np = np.asarray(b2, dtype=np.float32)          # (2D,)
    sf_np = np.asarray(scaling_factor, dtype=np.float32)
    H = int(w1_np.shape[1])
    one_m = 1.0 - mask_np

    w1mT = (w1_np * mask_np[:, None]).T               # (H, D)   mask folded in
    b1c = b1_np.reshape(H, 1)

    w2t_m = w2_np[:, D:] * one_m[None, :]             # (H, D)   (1-mask) folded in
    b2t_m = b2_np[D:] * one_m                         # (D,)
    w2s_tr = w2_np[:, :D][:, idx_tr]                  # (H, Dt)  transformed cols only
    b2s_tr = b2_np[:D][idx_tr]                        # (Dt,)
    w2stT = np.concatenate([w2t_m.T, w2s_tr.T], axis=0)        # (D + Dt, H)
    b2st = np.concatenate([b2t_m, b2s_tr]).reshape(D + Dt, 1)

    pexp = np.zeros((D, Dt), dtype=np.float32)        # scatter: transformed -> all
    pexp[idx_tr, np.arange(Dt)] = 1.0

    sfac = np.exp(sf_np[idx_tr]).reshape(Dt, 1)       # exact, precomputed
    isfac = np.exp(-sf_np[idx_tr]).reshape(Dt, 1)
    mask_col = mask_np.reshape(D, 1)

    return tuple(jnp.asarray(a, dtype=jnp.float32) for a in
                 (w1mT, b1c, w2stT, b2st, pexp, sfac, isfac, mask_col))


@functools.partial(jax.jit, static_argnames=("reverse", "block_b"))
def _coupling_apply(z, ldj, w1mT, b1c, w2stT, b2st, pexp, sfac, isfac,
                    mask_col, *, reverse, block_b):
    f32 = jnp.float32
    B, D = z.shape
    H = b1c.shape[0]
    Dt = sfac.shape[0]

    z = z.astype(f32)
    ldj2 = ldj.astype(f32).reshape(1, B)              # free reshape

    # Pad only up to the 128-lane granule (no-op when B is already aligned).
    B_pad = _round_up(B, 128)
    if B_pad != B:
        z = jnp.pad(z, ((0, B_pad - B), (0, 0)))
        ldj2 = jnp.pad(ldj2, ((0, 0), (0, B_pad - B)))

    TB = _pick_batch_tile(B_pad, block_b)
    num_tiles = B_pad // TB

    z_spec = pl.BlockSpec((TB, D), lambda i: (i, 0))
    ldj_spec = pl.BlockSpec((1, TB), lambda i: (0, i))

    def res(shape):                                   # tiny resident parameters
        return pl.BlockSpec(shape, lambda i: (0, 0))

    z_out, ldj_out = pl.pallas_call(
        _make_coupling_kernel(reverse),
        grid=(num_tiles,),
        in_specs=[
            z_spec,                  # z        (TB, D) tile
            ldj_spec,                # ldj      (1, TB) tile
            res((H, D)),             # (w1 * mask)^T
            res((H, 1)),             # b1
            res((D + Dt, H)),        # [w2_t*(1-mask) ; w2_s[:, transformed]]^T
            res((D + Dt, 1)),        # matching fused bias
            res((D, Dt)),            # scatter matrix (transformed -> all channels)
            res((Dt, 1)),            # exp( scaling_factor) on transformed channels
            res((Dt, 1)),            # exp(-scaling_factor) on transformed channels
            res((D, 1)),             # mask column (adds exp(0)=1 on identity rows)
        ],
        out_specs=(z_spec, ldj_spec),
        out_shape=(
            jax.ShapeDtypeStruct((B_pad, D), f32),
            jax.ShapeDtypeStruct((1, B_pad), f32),
        ),
        compiler_params=pltpu.CompilerParams(
            # "parallel" lets the batch grid axis split across TensorCores on
            # v7x; harmless on single-TC v5e/v6e.
            dimension_semantics=("parallel",),
            # Explicit scoped-VMEM budget: safe on v5e (16 MiB default) and
            # leaves headroom vs. v7x's 64 MiB physical VMEM.
            vmem_limit_bytes=32 * 1024 * 1024,
        ),
    )(z, ldj2, w1mT, b1c, w2stT, b2st, pexp, sfac, isfac, mask_col)

    return z_out[:B], ldj_out[0, :B]


def coupling_layer_apply(z, ldj, mask, scaling_factor, w1, b1, w2, b2,
                         *, reverse=False, block_b=4096):
    """Pallas-backed CouplingLayer forward/inverse.

    z: (B, D) f32, ldj: (B,) f32, mask: (D,) in {0,1}, scaling_factor: (D,),
    w1: (D, H), b1: (H,), w2: (H, 2D), b2: (2D,).
    Returns (z_out (B, D), ldj_out (B,)).
    """
    # In real use, call prepare_coupling_params once per layer and reuse.
    params = prepare_coupling_params(mask, scaling_factor, w1, b1, w2, b2)
    return _coupling_apply(z, ldj, *params, reverse=reverse, block_b=block_b)


def _reference(z, ldj, mask, scaling_factor, w1, b1, w2, b2, reverse=False):
    """Pure-JAX (f32) reference mirroring the PyTorch forward."""
    z_in = z * mask[None, :]
    h = jnp.maximum(z_in @ w1 + b1[None, :], 0.0)
    nn_out = h @ w2 + b2[None, :]
    D = z.shape[1]
    s, t = nn_out[:, :D], nn_out[:, D:]
    s_fac = jnp.exp(scaling_factor)[None, :]
    s = jnp.tanh(s / s_fac) * s_fac
    s = s * (1.0 - mask)[None, :]
    t = t * (1.0 - mask)[None, :]
    if not reverse:
        z_out = (z + t) * jnp.exp(s)
        ldj_out = ldj + jnp.sum(s, axis=1)
    else:
        z_out = z * jnp.exp(-s) - t
        ldj_out = ldj - jnp.sum(s, axis=1)
    return z_out, ldj_out


if __name__ == "__main__":
    B, D, H = 256, 16, 32

    key = jax.random.PRNGKey(0)
    k_z, k_ldj, k_sf, k_w1, k_b1, k_w2, k_b2 = jax.random.split(key, 7)

    z = jax.random.normal(k_z, (B, D), dtype=jnp.float32)
    ldj = jax.random.normal(k_ldj, (B,), dtype=jnp.float32)

    # Checkerboard-style binary mask over channels (even channels transformed).
    mask = (jnp.arange(D) % 2).astype(jnp.float32)
    scaling_factor = 0.1 * jax.random.normal(k_sf, (D,), dtype=jnp.float32)

    # Deterministic MLP weights for the `network` (D -> H -> 2D).
    w1 = 0.1 * jax.random.normal(k_w1, (D, H), dtype=jnp.float32)
    b1 = 0.1 * jax.random.normal(k_b1, (H,), dtype=jnp.float32)
    w2 = 0.1 * jax.random.normal(k_w2, (H, 2 * D), dtype=jnp.float32)
    b2 = 0.1 * jax.random.normal(k_b2, (2 * D,), dtype=jnp.float32)

    # B=256 -> padded batch 256 -> 2 batch tiles of 128 (exercises the
    # pipeline and the v7x-friendly >=2-tile grid).
    z_fwd, ldj_fwd = coupling_layer_apply(z, ldj, mask, scaling_factor,
                                          w1, b1, w2, b2, reverse=False)
    jax.block_until_ready((z_fwd, ldj_fwd))

    z_ref, ldj_ref = _reference(z, ldj, mask, scaling_factor, w1, b1, w2, b2)
    assert jnp.allclose(z_fwd, z_ref, atol=3e-2, rtol=3e-2), "z (forward) mismatch"
    assert jnp.allclose(ldj_fwd, ldj_ref, atol=5e-2, rtol=5e-2), "ldj (forward) mismatch"

    # Inverse pass should undo the forward pass (errors cancel, so it's tight).
    z_rec, ldj_rec = coupling_layer_apply(z_fwd, ldj_fwd, mask, scaling_factor,
                                          w1, b1, w2, b2, reverse=True)
    jax.block_until_ready((z_rec, ldj_rec))
    assert jnp.allclose(z_rec, z, atol=1e-4, rtol=1e-4), "z (reverse) mismatch"
    assert jnp.allclose(ldj_rec, ldj, atol=1e-4, rtol=1e-4), "ldj (reverse) mismatch"

    print("KERNEL_OK")
</pallas_src>

<mosaic_0001>
module attributes {stable_mosaic.version = 11 : i64} {
  func.func @kernel(%arg0: i32, %arg1: memref<128x16xf32, #tpu.memory_space<vmem>>, %arg2: memref<1x128xf32, #tpu.memory_space<vmem>>, %arg3: memref<32x16xf32, #tpu.memory_space<vmem>>, %arg4: memref<32x1xf32, #tpu.memory_space<vmem>>, %arg5: memref<24x32xf32, #tpu.memory_space<vmem>>, %arg6: memref<24x1xf32, #tpu.memory_space<vmem>>, %arg7: memref<16x8xf32, #tpu.memory_space<vmem>>, %arg8: memref<8x1xf32, #tpu.memory_space<vmem>>, %arg9: memref<8x1xf32, #tpu.memory_space<vmem>>, %arg10: memref<16x1xf32, #tpu.memory_space<vmem>>, %arg11: memref<128x16xf32, #tpu.memory_space<vmem>>, %arg12: memref<1x128xf32, #tpu.memory_space<vmem>>) attributes {dimension_semantics = [#tpu.dimension_semantics<parallel>], iteration_bounds = array<i64: 2>, scalar_prefetch = 0 : i64, scratch_operands = 0 : i64, tpu.core_type = #tpu.core_type<tc>, window_params = [{transform_indices = @transform_0, window_bounds = array<i64: 128, 16>}, {transform_indices = @transform_1, window_bounds = array<i64: 1, 128>}, {pipeline_mode = #tpu.pipeline_mode<synchronous>, transform_indices = @transform_2, window_bounds = array<i64: 32, 16>}, {pipeline_mode = #tpu.pipeline_mode<synchronous>, transform_indices = @transform_3, window_bounds = array<i64: 32, 1>}, {pipeline_mode = #tpu.pipeline_mode<synchronous>, transform_indices = @transform_4, window_bounds = array<i64: 24, 32>}, {pipeline_mode = #tpu.pipeline_mode<synchronous>, transform_indices = @transform_5, window_bounds = array<i64: 24, 1>}, {pipeline_mode = #tpu.pipeline_mode<synchronous>, transform_indices = @transform_6, window_bounds = array<i64: 16, 8>}, {pipeline_mode = #tpu.pipeline_mode<synchronous>, transform_indices = @transform_7, window_bounds = array<i64: 8, 1>}, {pipeline_mode = #tpu.pipeline_mode<synchronous>, transform_indices = @transform_8, window_bounds = array<i64: 8, 1>}, {pipeline_mode = #tpu.pipeline_mode<synchronous>, transform_indices = @transform_9, window_bounds = array<i64: 16, 1>}, {transform_indices = @transform_10, window_bounds = array<i64: 128, 16>}, {transform_indices = @transform_11, window_bounds = array<i64: 1, 128>}]} {
    %c0 = arith.constant 0 : index
    %c0_0 = arith.constant 0 : index
    %0 = vector.load %arg1[%c0, %c0_0] : memref<128x16xf32, #tpu.memory_space<vmem>>, vector<128x16xf32>
    %1 = tpu.transpose %0, [1, 0] : vector<128x16xf32> -> vector<16x128xf32>
    %c0_1 = arith.constant 0 : index
    %c0_2 = arith.constant 0 : index
    %2 = vector.load %arg3[%c0_1, %c0_2] : memref<32x16xf32, #tpu.memory_space<vmem>>, vector<32x16xf32>
    %cst = arith.constant dense<0.000000e+00> : vector<32x128xf32>
    %3 = tpu.matmul %2, %1, %cst {dimension_numbers = #tpu.dot_dimension_numbers<[1], [0], [0], [1], [0, 0, 1, 1], [], []>} : vector<32x16xf32>, vector<16x128xf32>, vector<32x128xf32> -> vector<32x128xf32>
    %c0_3 = arith.constant 0 : index
    %c0_4 = arith.constant 0 : index
    %4 = vector.load %arg4[%c0_3, %c0_4] : memref<32x1xf32, #tpu.memory_space<vmem>>, vector<32x1xf32>
    %5 = vector.broadcast %4 : vector<32x1xf32> to vector<32x128xf32>
    %6 = arith.addf %3, %5 : vector<32x128xf32>
    %cst_5 = arith.constant 0.000000e+00 : f32
    %7 = vector.broadcast %cst_5 : f32 to vector<32x128xf32>
    %8 = arith.maximumf %6, %7 : vector<32x128xf32>
    %c0_6 = arith.constant 0 : index
    %c0_7 = arith.constant 0 : index
    %9 = vector.load %arg5[%c0_6, %c0_7] : memref<24x32xf32, #tpu.memory_space<vmem>>, vector<24x32xf32>
    %cst_8 = arith.constant dense<0.000000e+00> : vector<24x128xf32>
    %10 = tpu.matmul %9, %8, %cst_8 {dimension_numbers = #tpu.dot_dimension_numbers<[1], [0], [0], [1], [0, 0, 1, 1], [], []>} : vector<24x32xf32>, vector<32x128xf32>, vector<24x128xf32> -> vector<24x128xf32>
    %c0_9 = arith.constant 0 : index
    %c0_10 = arith.constant 0 : index
    %11 = vector.load %arg6[%c0_9, %c0_10] : memref<24x1xf32, #tpu.memory_space<vmem>>, vector<24x1xf32>
    %12 = vector.broadcast %11 : vector<24x1xf32> to vector<24x128xf32>
    %13 = arith.addf %10, %12 : vector<24x128xf32>
    %14 = vector.extract_strided_slice %13 {offsets = [0, 0], sizes = [16, 128], strides = [1, 1]} : vector<24x128xf32> to vector<16x128xf32>
    %15 = vector.extract_strided_slice %13 {offsets = [16, 0], sizes = [8, 128], strides = [1, 1]} : vector<24x128xf32> to vector<8x128xf32>
    %c0_11 = arith.constant 0 : index
    %c0_12 = arith.constant 0 : index
    %16 = vector.load %arg9[%c0_11, %c0_12] : memref<8x1xf32, #tpu.memory_space<vmem>>, vector<8x1xf32>
    %17 = vector.broadcast %16 : vector<8x1xf32> to vector<8x128xf32>
    %18 = arith.mulf %15, %17 : vector<8x128xf32>
    %19 = math.tanh %18 : vector<8x128xf32>
    %c0_13 = arith.constant 0 : index
    %c0_14 = arith.constant 0 : index
    %20 = vector.load %arg8[%c0_13, %c0_14] : memref<8x1xf32, #tpu.memory_space<vmem>>, vector<8x1xf32>
    %21 = vector.broadcast %20 : vector<8x1xf32> to vector<8x128xf32>
    %22 = arith.mulf %19, %21 : vector<8x128xf32>
    %cst_15 = arith.constant dense<0.000000e+00> : vector<128xf32>
    %23 = vector.multi_reduction <add>, %22, %cst_15 [0] : vector<8x128xf32> to vector<128xf32>
    %24 = vector.shape_cast %23 : vector<128xf32> to vector<1x128xf32>
    %25 = math.exp %22 : vector<8x128xf32>
    %c0_16 = arith.constant 0 : index
    %c0_17 = arith.constant 0 : index
    %26 = vector.load %arg7[%c0_16, %c0_17] : memref<16x8xf32, #tpu.memory_space<vmem>>, vector<16x8xf32>
    %cst_18 = arith.constant dense<0.000000e+00> : vector<16x128xf32>
    %27 = tpu.matmul %26, %25, %cst_18 {dimension_numbers = #tpu.dot_dimension_numbers<[1], [0], [0], [1], [0, 0, 1, 1], [], []>} : vector<16x8xf32>, vector<8x128xf32>, vector<16x128xf32> -> vector<16x128xf32>
    %c0_19 = arith.constant 0 : index
    %c0_20 = arith.constant 0 : index
    %28 = vector.load %arg10[%c0_19, %c0_20] : memref<16x1xf32, #tpu.memory_space<vmem>>, vector<16x1xf32>
    %29 = vector.broadcast %28 : vector<16x1xf32> to vector<16x128xf32>
    %30 = arith.addf %27, %29 : vector<16x128xf32>
    %31 = arith.addf %1, %14 : vector<16x128xf32>
    %32 = arith.mulf %31, %30 : vector<16x128xf32>
    %c0_21 = arith.constant 0 : index
    %c0_22 = arith.constant 0 : index
    %33 = vector.load %arg2[%c0_21, %c0_22] : memref<1x128xf32, #tpu.memory_space<vmem>>, vector<1x128xf32>
    %34 = arith.addf %33, %24 : vector<1x128xf32>
    %c0_23 = arith.constant 0 : index
    %c0_24 = arith.constant 0 : index
    %35 = vector.load %arg12[%c0_23, %c0_24] : memref<1x128xf32, #tpu.memory_space<vmem>>, vector<1x128xf32>
    tpu.vector_store %arg12[%c0_23, %c0_24], %34 {strides = array<i32>} : memref<1x128xf32, #tpu.memory_space<vmem>>, vector<1x128xf32>,
    %36 = tpu.transpose %32, [1, 0] : vector<16x128xf32> -> vector<128x16xf32>
    %c0_25 = arith.constant 0 : index
    %c0_26 = arith.constant 0 : index
    %37 = vector.load %arg11[%c0_25, %c0_26] : memref<128x16xf32, #tpu.memory_space<vmem>>, vector<128x16xf32>
    tpu.vector_store %arg11[%c0_25, %c0_26], %36 {strides = array<i32>} : memref<128x16xf32, #tpu.memory_space<vmem>>, vector<128x16xf32>,
    return
  }
  func.func @transform_0(%arg0: i32) -> (i32, i32) {
    %c0_i32 = arith.constant 0 : i32
    %c0_i32_0 = arith.constant 0 : i32
    return %arg0, %c0_i32 : i32, i32
  }
  func.func @transform_1(%arg0: i32) -> (i32, i32) {
    %c0_i32 = arith.constant 0 : i32
    %c0_i32_0 = arith.constant 0 : i32
    return %c0_i32, %arg0 : i32, i32
  }
  func.func @transform_2(%arg0: i32) -> (i32, i32) {
    %c0_i32 = arith.constant 0 : i32
    %c0_i32_0 = arith.constant 0 : i32
    %c0_i32_1 = arith.constant 0 : i32
    return %c0_i32, %c0_i32_0 : i32, i32
  }
  func.func @transform_3(%arg0: i32) -> (i32, i32) {
    %c0_i32 = arith.constant 0 : i32
    %c0_i32_0 = arith.constant 0 : i32
    %c0_i32_1 = arith.constant 0 : i32
    return %c0_i32, %c0_i32_0 : i32, i32
  }
  func.func @transform_4(%arg0: i32) -> (i32, i32) {
    %c0_i32 = arith.constant 0 : i32
    %c0_i32_0 = arith.constant 0 : i32
    %c0_i32_1 = arith.constant 0 : i32
    return %c0_i32, %c0_i32_0 : i32, i32
  }
  func.func @transform_5(%arg0: i32) -> (i32, i32) {
    %c0_i32 = arith.constant 0 : i32
    %c0_i32_0 = arith.constant 0 : i32
    %c0_i32_1 = arith.constant 0 : i32
    return %c0_i32, %c0_i32_0 : i32, i32
  }
  func.func @transform_6(%arg0: i32) -> (i32, i32) {
    %c0_i32 = arith.constant 0 : i32
    %c0_i32_0 = arith.constant 0 : i32
    %c0_i32_1 = arith.constant 0 : i32
    return %c0_i32, %c0_i32_0 : i32, i32
  }
  func.func @transform_7(%arg0: i32) -> (i32, i32) {
    %c0_i32 = arith.constant 0 : i32
    %c0_i32_0 = arith.constant 0 : i32
    %c0_i32_1 = arith.constant 0 : i32
    return %c0_i32, %c0_i32_0 : i32, i32
  }
  func.func @transform_8(%arg0: i32) -> (i32, i32) {
    %c0_i32 = arith.constant 0 : i32
    %c0_i32_0 = arith.constant 0 : i32
    %c0_i32_1 = arith.constant 0 : i32
    return %c0_i32, %c0_i32_0 : i32, i32
  }
  func.func @transform_9(%arg0: i32) -> (i32, i32) {
    %c0_i32 = arith.constant 0 : i32
    %c0_i32_0 = arith.constant 0 : i32
    %c0_i32_1 = arith.constant 0 : i32
    return %c0_i32, %c0_i32_0 : i32, i32
  }
  func.func @transform_10(%arg0: i32) -> (i32, i32) {
    %c0_i32 = arith.constant 0 : i32
    %c0_i32_0 = arith.constant 0 : i32
    return %arg0, %c0_i32 : i32, i32
  }
  func.func @transform_11(%arg0: i32) -> (i32, i32) {
    %c0_i32 = arith.constant 0 : i32
    %c0_i32_0 = arith.constant 0 : i32
    return %c0_i32, %arg0 : i32, i32
  }
}

</mosaic_0001>

<llo_original>
// kernel: _coupling_apply.1
$region0: #{_coupling_apply.1}
  #allocation0 [shape = 'u32[]', space=smem, size = 0x4, offset = 0x4, fixed_abs, tag = 'smem constant byte address 0x4 - core index']
  #allocation1 [shape = 'u32[72,128]{1,0:T(1,128)}', space=vmem, size = 0x9000, scoped, tag = 'internal scratch']
  %s0 = inlined_call_operand.vmem [shape: f32[256,16], index: 0, kind: input, shape index: {}]
  %s1 = inlined_call_operand.vmem [shape: f32[1,256], index: 1, kind: input, shape index: {}]
  %s2 = inlined_call_operand.vmem [shape: f32[32,16], index: 2, kind: input, shape index: {}]
  %s3 = inlined_call_operand.vmem [shape: f32[32,1], index: 3, kind: input, shape index: {}]
  %s4 = inlined_call_operand.vmem [shape: f32[24,32], index: 4, kind: input, shape index: {}]
  %s5 = inlined_call_operand.vmem [shape: f32[24,1], index: 5, kind: input, shape index: {}]
  %s6 = inlined_call_operand.vmem [shape: f32[16,8], index: 6, kind: input, shape index: {}]
  %s7 = inlined_call_operand.vmem [shape: f32[8,1], index: 7, kind: input, shape index: {}]
  %s8 = inlined_call_operand.vmem [shape: f32[8,1], index: 8, kind: input, shape index: {}]
  %s9 = inlined_call_operand.vmem [shape: f32[16,1], index: 9, kind: input, shape index: {}]
  %s10 = inlined_call_operand.vmem [shape: f32[256,16], index: 10, kind: output, shape index: {0}]
  %s11 = inlined_call_operand.hbm [shape: f32[1,256], index: 11, kind: output, shape index: {1}]
  %12 = xla_tuple %s10, %s11
  %s13 = sld [smem:[#allocation0]]
  $region81: #{_coupling_apply.1} parent=0
    _
  %s15 = ssub.s32 1, %s13
  %s16 = scalar_select 0, %s15, %s13
  $region1: #{_coupling_apply.1} parent=0
    #allocation2 [shape = 'u8[1024]{0}', space=vmem, size = 0x400, scoped, tag = 'output window, operand 1']
    #allocation3 [shape = 's32[2]{0}', space=sflag, size = 0x8, scoped, tag = 'scoped memory for _coupling_apply.1']
    %17 = vsyncpa [#allocation3], 0
    %s18 = scalar_lea.sflag [#allocation3], 1
    %19 = vsyncpa %s18, 0
    loop: start=0, step=1, limit=4
    $region2: #{_coupling_apply.1} parent=1 // loop_pre_header
      _
    $region3: #{_coupling_apply.1} parent=1 // loop_header
      %s21 = sphi 0, %s25
      %p22 = scmp.ge.s32.totalorder %s21, 4
      %s31 = sphi 0, %s33
      %s34 = sphi 0, %s31
      %s35 = sphi 0, %s34
      %s51 = sphi 0, %s35
      %s57 = sphi 0, %s59
      %s60 = sphi 0, %s57
      %s61 = sphi 0, %s60
      %s77 = sphi 0, %s61
      %s81 = sphi 0, %s81
      %s83 = sphi 0, %s81
      %s84 = sphi 0, %s83
      %s98 = sphi 0, %s84
      %s102 = sphi 0, %s102
      %s104 = sphi 0, %s102
      %s105 = sphi 0, %s104
      %s119 = sphi 0, %s105
      %s123 = sphi 0, %s123
      %s125 = sphi 0, %s123
      %s126 = sphi 0, %s125
      %s140 = sphi 0, %s126
      %s144 = sphi 0, %s144
      %s146 = sphi 0, %s144
      %s147 = sphi 0, %s146
      %s161 = sphi 0, %s147
      %s165 = sphi 0, %s165
      %s167 = sphi 0, %s165
      %s168 = sphi 0, %s167
      %s182 = sphi 0, %s168
      %s186 = sphi 0, %s186
      %s188 = sphi 0, %s186
      %s189 = sphi 0, %s188
      %s203 = sphi 0, %s189
      %s207 = sphi 0, %s207
      %s209 = sphi 0, %s207
      %s210 = sphi 0, %s209
      %s224 = sphi 0, %s210
      %s228 = sphi 0, %s228
      %s230 = sphi 0, %s228
      %s231 = sphi 0, %s230
      %s245 = sphi 0, %s231
      %s251 = sphi 0, %s253
      %s254 = sphi 0, %s251
      %s255 = sphi 0, %s254
      %s271 = sphi 0, %s255
      %s277 = sphi 0, %s279
      %s280 = sphi 0, %s277
      %s281 = sphi 0, %s280
      %s297 = sphi 0, %s281
    $region4: #{_coupling_apply.1} parent=1 // loop_header_branch
      %24 = sbr.rel (%p22) target = $region8
    $region5: #{_coupling_apply.1} parent=1 // loop_body
      %s26 = ssub.s32 %s21, 1
      %s27 = ssub.s32 %s21, 2
      %s28 = sadd.s32 %s21, 1
      %s29 = ssub.s32 %s21, %s28
      %p30 = scmp.eq.s32.totalorder %s29, 0
      %s32 = sadd.s32 %s31, 1
      %s33 = scalar_select %p30, %s31, %s32
      %p36 = pneg %p30
      %p37 = scmp.eq.s32.totalorder %s21, 1
      %p38 = por %p36, %p37
      %p39 = scmp.ne.s32.totalorder %s31, %s34
      %p40 = scmp.eq.s32.totalorder %s21, 0
      %p41 = por %p39, %p40
      %p42 = scmp.ne.s32.totalorder %s31, %s34
      %p43 = scmp.eq.s32.totalorder %s26, 1
      %p44 = por %p42, %p43
      %p45 = scmp.ne.s32.totalorder %s34, %s35
      %p46 = scmp.eq.s32.totalorder %s26, 0
      %p47 = por %p45, %p46
      %p48 = scmp.ne.s32.totalorder %s34, %s35
      %p49 = scmp.eq.s32.totalorder %s27, 1
      %p50 = por %p48, %p49
      %p52 = scmp.ne.s32.totalorder %s35, %s51
      %p53 = scmp.eq.s32.totalorder %s27, 0
      %p54 = por %p52, %p53
      %s55 = ssub.s32 %s21, %s28
      %p56 = scmp.eq.s32.totalorder %s55, 0
      %s58 = sadd.s32 %s57, 1
      %s59 = scalar_select %p56, %s57, %s58
      %p62 = pneg %p56
      %p63 = scmp.eq.s32.totalorder %s21, 1
      %p64 = por %p62, %p63
      %p65 = scmp.ne.s32.totalorder %s57, %s60
      %p66 = scmp.eq.s32.totalorder %s21, 0
      %p67 = por %p65, %p66
      %p68 = scmp.ne.s32.totalorder %s57, %s60
      %p69 = scmp.eq.s32.totalorder %s26, 1
      %p70 = por %p68, %p69
      %p71 = scmp.ne.s32.totalorder %s60, %s61
      %p72 = scmp.eq.s32.totalorder %s26, 0
      %p73 = por %p71, %p72
      %p74 = scmp.ne.s32.totalorder %s60, %s61
      %p75 = scmp.eq.s32.totalorder %s27, 1
      %p76 = por %p74, %p75
      %p78 = scmp.ne.s32.totalorder %s61, %s77
      %p79 = scmp.eq.s32.totalorder %s27, 0
      %p80 = por %p78, %p79
      %s82 = sadd.s32 %s81, 1
      %p85 = scmp.eq.s32.totalorder %s21, 1
      %p86 = scmp.ne.s32.totalorder %s81, %s83
      %p87 = scmp.eq.s32.totalorder %s21, 0
      %p88 = por %p86, %p87
      %p89 = scmp.ne.s32.totalorder %s81, %s83
      %p90 = scmp.eq.s32.totalorder %s26, 1
      %p91 = por %p89, %p90
      %p92 = scmp.ne.s32.totalorder %s83, %s84
      %p93 = scmp.eq.s32.totalorder %s26, 0
      %p94 = por %p92, %p93
      %p95 = scmp.ne.s32.totalorder %s83, %s84
      %p96 = scmp.eq.s32.totalorder %s27, 1
      %p97 = por %p95, %p96
      %p99 = scmp.ne.s32.totalorder %s84, %s98
      %p100 = scmp.eq.s32.totalorder %s27, 0
      %p101 = por %p99, %p100
      %s103 = sadd.s32 %s102, 1
      %p106 = scmp.eq.s32.totalorder %s21, 1
      %p107 = scmp.ne.s32.totalorder %s102, %s104
      %p108 = scmp.eq.s32.totalorder %s21, 0
      %p109 = por %p107, %p108
      %p110 = scmp.ne.s32.totalorder %s102, %s104
      %p111 = scmp.eq.s32.totalorder %s26, 1
      %p112 = por %p110, %p111
      %p113 = scmp.ne.s32.totalorder %s104, %s105
      %p114 = scmp.eq.s32.totalorder %s26, 0
      %p115 = por %p113, %p114
      %p116 = scmp.ne.s32.totalorder %s104, %s105
      %p117 = scmp.eq.s32.totalorder %s27, 1
      %p118 = por %p116, %p117
      %p120 = scmp.ne.s32.totalorder %s105, %s119
      %p121 = scmp.eq.s32.totalorder %s27, 0
      %p122 = por %p120, %p121
      %s124 = sadd.s32 %s123, 1
      %p127 = scmp.eq.s32.totalorder %s21, 1
      %p128 = scmp.ne.s32.totalorder %s123, %s125
      %p129 = scmp.eq.s32.totalorder %s21, 0
      %p130 = por %p128, %p129
      %p131 = scmp.ne.s32.totalorder %s123, %s125
      %p132 = scmp.eq.s32.totalorder %s26, 1
      %p133 = por %p131, %p132
      %p134 = scmp.ne.s32.totalorder %s125, %s126
      %p135 = scmp.eq.s32.totalorder %s26, 0
      %p136 = por %p134, %p135
      %p137 = scmp.ne.s32.totalorder %s125, %s126
      %p138 = scmp.eq.s32.totalorder %s27, 1
      %p139 = por %p137, %p138
      %p141 = scmp.ne.s32.totalorder %s126, %s140
      %p142 = scmp.eq.s32.totalorder %s27, 0
      %p143 = por %p141, %p142
      %s145 = sadd.s32 %s144, 1
      %p148 = scmp.eq.s32.totalorder %s21, 1
      %p149 = scmp.ne.s32.totalorder %s144, %s146
      %p150 = scmp.eq.s32.totalorder %s21, 0
      %p151 = por %p149, %p150
      %p152 = scmp.ne.s32.totalorder %s144, %s146
      %p153 = scmp.eq.s32.totalorder %s26, 1
      %p154 = por %p152, %p153
      %p155 = scmp.ne.s32.totalorder %s146, %s147
      %p156 = scmp.eq.s32.totalorder %s26, 0
      %p157 = por %p155, %p156
      %p158 = scmp.ne.s32.totalorder %s146, %s147
      %p159 = scmp.eq.s32.totalorder %s27, 1
      %p160 = por %p158, %p159
      %p162 = scmp.ne.s32.totalorder %s147, %s161
      %p163 = scmp.eq.s32.totalorder %s27, 0
      %p164 = por %p162, %p163
      %s166 = sadd.s32 %s165, 1
      %p169 = scmp.eq.s32.totalorder %s21, 1
      %p170 = scmp.ne.s32.totalorder %s165, %s167
      %p171 = scmp.eq.s32.totalorder %s21, 0
      %p172 = por %p170, %p171
      %p173 = scmp.ne.s32.totalorder %s165, %s167
      %p174 = scmp.eq.s32.totalorder %s26, 1
      %p175 = por %p173, %p174
      %p176 = scmp.ne.s32.totalorder %s167, %s168
      %p177 = scmp.eq.s32.totalorder %s26, 0
      %p178 = por %p176, %p177
      %p179 = scmp.ne.s32.totalorder %s167, %s168
      %p180 = scmp.eq.s32.totalorder %s27, 1
      %p181 = por %p179, %p180
      %p183 = scmp.ne.s32.totalorder %s168, %s182
      %p184 = scmp.eq.s32.totalorder %s27, 0
      %p185 = por %p183, %p184
      %s187 = sadd.s32 %s186, 1
      %p190 = scmp.eq.s32.totalorder %s21, 1
      %p191 = scmp.ne.s32.totalorder %s186, %s188
      %p192 = scmp.eq.s32.totalorder %s21, 0
      %p193 = por %p191, %p192
      %p194 = scmp.ne.s32.totalorder %s186, %s188
      %p195 = scmp.eq.s32.totalorder %s26, 1
      %p196 = por %p194, %p195
      %p197 = scmp.ne.s32.totalorder %s188, %s189
      %p198 = scmp.eq.s32.totalorder %s26, 0
      %p199 = por %p197, %p198
      %p200 = scmp.ne.s32.totalorder %s188, %s189
      %p201 = scmp.eq.s32.totalorder %s27, 1
      %p202 = por %p200, %p201
      %p204 = scmp.ne.s32.totalorder %s189, %s203
      %p205 = scmp.eq.s32.totalorder %s27, 0
      %p206 = por %p204, %p205
      %s208 = sadd.s32 %s207, 1
      %p211 = scmp.eq.s32.totalorder %s21, 1
      %p212 = scmp.ne.s32.totalorder %s207, %s209
      %p213 = scmp.eq.s32.totalorder %s21, 0
      %p214 = por %p212, %p213
      %p215 = scmp.ne.s32.totalorder %s207, %s209
      %p216 = scmp.eq.s32.totalorder %s26, 1
      %p217 = por %p215, %p216
      %p218 = scmp.ne.s32.totalorder %s209, %s210
      %p219 = scmp.eq.s32.totalorder %s26, 0
      %p220 = por %p218, %p219
      %p221 = scmp.ne.s32.totalorder %s209, %s210
      %p222 = scmp.eq.s32.totalorder %s27, 1
      %p223 = por %p221, %p222
      %p225 = scmp.ne.s32.totalorder %s210, %s224
      %p226 = scmp.eq.s32.totalorder %s27, 0
      %p227 = por %p225, %p226
      %s229 = sadd.s32 %s228, 1
      %p232 = scmp.eq.s32.totalorder %s21, 1
      %p233 = scmp.ne.s32.totalorder %s228, %s230
      %p234 = scmp.eq.s32.totalorder %s21, 0
      %p235 = por %p233, %p234
      %p236 = scmp.ne.s32.totalorder %s228, %s230
      %p237 = scmp.eq.s32.totalorder %s26, 1
      %p238 = por %p236, %p237
      %p239 = scmp.ne.s32.totalorder %s230, %s231
      %p240 = scmp.eq.s32.totalorder %s26, 0
      %p241 = por %p239, %p240
      %p242 = scmp.ne.s32.totalorder %s230, %s231
      %p243 = scmp.eq.s32.totalorder %s27, 1
      %p244 = por %p242, %p243
      %p246 = scmp.ne.s32.totalorder %s231, %s245
      %p247 = scmp.eq.s32.totalorder %s27, 0
      %p248 = por %p246, %p247
      %s249 = ssub.s32 %s21, %s28
      %p250 = scmp.eq.s32.totalorder %s249, 0
      %s252 = sadd.s32 %s251, 1
      %s253 = scalar_select %p250, %s251, %s252
      %p256 = pneg %p250
      %p257 = scmp.eq.s32.totalorder %s21, 1
      %p258 = por %p256, %p257
      %p259 = scmp.ne.s32.totalorder %s251, %s254
      %p260 = scmp.eq.s32.totalorder %s21, 0
      %p261 = por %p259, %p260
      %p262 = scmp.ne.s32.totalorder %s251, %s254
      %p263 = scmp.eq.s32.totalorder %s26, 1
      %p264 = por %p262, %p263
      %p265 = scmp.ne.s32.totalorder %s254, %s255
      %p266 = scmp.eq.s32.totalorder %s26, 0
      %p267 = por %p265, %p266
      %p268 = scmp.ne.s32.totalorder %s254, %s255
      %p269 = scmp.eq.s32.totalorder %s27, 1
      %p270 = por %p268, %p269
      %p272 = scmp.ne.s32.totalorder %s255, %s271
      %p273 = scmp.eq.s32.totalorder %s27, 0
      %p274 = por %p272, %p273
      %s275 = ssub.s32 %s21, %s28
      %p276 = scmp.eq.s32.totalorder %s275, 0
      %s278 = sadd.s32 %s277, 1
      %s279 = scalar_select %p276, %s277, %s278
      %p282 = pneg %p276
      %p283 = scmp.eq.s32.totalorder %s21, 1
      %p284 = por %p282, %p283
      %p285 = scmp.ne.s32.totalorder %s277, %s280
      %p286 = scmp.eq.s32.totalorder %s21, 0
      %p287 = por %p285, %p286
      %p288 = scmp.ne.s32.totalorder %s277, %s280
      %p289 = scmp.eq.s32.totalorder %s26, 1
      %p290 = por %p288, %p289
      %p291 = scmp.ne.s32.totalorder %s280, %s281
      %p292 = scmp.eq.s32.totalorder %s26, 0
      %p293 = por %p291, %p292
      %p294 = scmp.ne.s32.totalorder %s280, %s281
      %p295 = scmp.eq.s32.totalorder %s27, 1
      %p296 = por %p294, %p295
      %p298 = scmp.ne.s32.totalorder %s281, %s297
      %p299 = scmp.eq.s32.totalorder %s27, 0
      %p300 = por %p298, %p299
      %p301 = scmp.le.s32.totalorder 1, %s21
      %p302 = scmp.lt.s32.totalorder %s21, 3
      %p303 = pnand %p301, %p302
      %p304 = pneg %p303
      // Predicated region
      $region9: #{_coupling_apply.1} parent=5 // pred_check
        _
      $region10: #{_coupling_apply.1} parent=5 // pred_check_branch
        %306 = sbr.rel (%p303) target = $region12
      $region11: #{_coupling_apply.1} parent=5 // pred_region
        %s307 = ssub.s32 %s21, 1
        // Predicated region
        $region13: #{_coupling_apply.1} parent=11 // pred_check
          %p308 = pneg %p94
        $region14: #{_coupling_apply.1} parent=11 // pred_check_branch
          %310 = sbr.rel (%p308) target = $region16
        $region15: #{_coupling_apply.1} parent=11 // pred_region
          _
        $region16: #{_coupling_apply.1} parent=11 // pred_fallthru
          _
        // Predicated region
        $region17: #{_coupling_apply.1} parent=11 // pred_check
          %p311 = pneg %p115
        $region18: #{_coupling_apply.1} parent=11 // pred_check_branch
          %313 = sbr.rel (%p311) target = $region20
        $region19: #{_coupling_apply.1} parent=11 // pred_region
          _
        $region20: #{_coupling_apply.1} parent=11 // pred_fallthru
          _
        // Predicated region
        $region21: #{_coupling_apply.1} parent=11 // pred_check
          %p314 = pneg %p136
        $region22: #{_coupling_apply.1} parent=11 // pred_check_branch
          %316 = sbr.rel (%p314) target = $region24
        $region23: #{_coupling_apply.1} parent=11 // pred_region
          _
        $region24: #{_coupling_apply.1} parent=11 // pred_fallthru
          _
        // Predicated region
        $region25: #{_coupling_apply.1} parent=11 // pred_check
          %p317 = pneg %p157
        $region26: #{_coupling_apply.1} parent=11 // pred_check_branch
          %319 = sbr.rel (%p317) target = $region28
        $region27: #{_coupling_apply.1} parent=11 // pred_region
          _
        $region28: #{_coupling_apply.1} parent=11 // pred_fallthru
          _
        // Predicated region
        $region29: #{_coupling_apply.1} parent=11 // pred_check
          %p320 = pneg %p178
        $region30: #{_coupling_apply.1} parent=11 // pred_check_branch
          %322 = sbr.rel (%p320) target = $region32
        $region31: #{_coupling_apply.1} parent=11 // pred_region
          _
        $region32: #{_coupling_apply.1} parent=11 // pred_fallthru
          _
        // Predicated region
        $region33: #{_coupling_apply.1} parent=11 // pred_check
          %p323 = pneg %p199
        $region34: #{_coupling_apply.1} parent=11 // pred_check_branch
          %325 = sbr.rel (%p323) target = $region36
        $region35: #{_coupling_apply.1} parent=11 // pred_region
          _
        $region36: #{_coupling_apply.1} parent=11 // pred_fallthru
          _
        // Predicated region
        $region37: #{_coupling_apply.1} parent=11 // pred_check
          %p326 = pneg %p220
        $region38: #{_coupling_apply.1} parent=11 // pred_check_branch
          %328 = sbr.rel (%p326) target = $region40
        $region39: #{_coupling_apply.1} parent=11 // pred_region
          _
        $region40: #{_coupling_apply.1} parent=11 // pred_fallthru
          _
        // Predicated region
        $region41: #{_coupling_apply.1} parent=11 // pred_check
          %p329 = pneg %p241
        $region42: #{_coupling_apply.1} parent=11 // pred_check_branch
          %331 = sbr.rel (%p329) target = $region44
        $region43: #{_coupling_apply.1} parent=11 // pred_region
          _
        $region44: #{_coupling_apply.1} parent=11 // pred_fallthru
          _
      $region12: #{_coupling_apply.1} parent=5 // pred_fallthru
        _
      %p332 = scmp.lt.s32.totalorder %s21, 2
      // Predicated region
      $region45: #{_coupling_apply.1} parent=5 // pred_check
        %p333 = pneg %p332
      $region46: #{_coupling_apply.1} parent=5 // pred_check_branch
        %335 = sbr.rel (%p333) target = $region48
      $region47: #{_coupling_apply.1} parent=5 // pred_region
        // Predicated region
        $region49: #{_coupling_apply.1} parent=47 // pred_check
          %p336 = pneg %p41
        $region50: #{_coupling_apply.1} parent=47 // pred_check_branch
          %338 = sbr.rel (%p336) target = $region52
        $region51: #{_coupling_apply.1} parent=47 // pred_region
          %s339 = smul.u32 16, %s21
          %p340 = scmp.lt.s32.totalorder %s339, 31
          %s341 = scalar_select %p340, %s339, 31
          %s342 = smul.addr %s341, 8
          %s343 = scalar_lea.vmem %s0, %s342
          %s344 = smul.u32 16, %s21
        $region52: #{_coupling_apply.1} parent=47 // pred_fallthru
          _
        // Predicated region
        $region53: #{_coupling_apply.1} parent=47 // pred_check
          %p345 = pneg %p67
        $region54: #{_coupling_apply.1} parent=47 // pred_check_branch
          %347 = sbr.rel (%p345) target = $region56
        $region55: #{_coupling_apply.1} parent=47 // pred_region
          %p348 = scmp.lt.s32.totalorder %s21, 1
          %s349 = scalar_select %p348, %s21, 1
          %s350 = scalar_lea.vmem %s1, %s349
        $region56: #{_coupling_apply.1} parent=47 // pred_fallthru
          _
      $region48: #{_coupling_apply.1} parent=5 // pred_fallthru
        _
      %p351 = scmp.le.s32.totalorder 1, %s21
      %p352 = scmp.lt.s32.totalorder %s21, 3
      %p353 = pnand %p351, %p352
      %p354 = pneg %p353
      // Predicated region
      $region57: #{_coupling_apply.1} parent=5 // pred_check
        _
      $region58: #{_coupling_apply.1} parent=5 // pred_check_branch
        %356 = sbr.rel (%p353) target = $region60
      $region59: #{_coupling_apply.1} parent=5 // pred_region
        %s357 = ssub.s32 %s21, 1
        %s358 = smul.u32 16, %s26
        %p359 = scmp.lt.s32.totalorder %s358, 31
        %s360 = scalar_select %p359, %s358, 31
        %s361 = smul.addr %s360, 8
        %s362 = scalar_lea.vmem %s0, %s361
        %p363 = pneg %p47
        %p364 = pneg %p44
        %p365 = scmp.lt.s32.totalorder %s26, 1
        %s366 = scalar_select %p365, %s26, 1
        %s367 = scalar_lea.vmem %s1, %s366
        %p368 = pneg %p73
        %p369 = pneg %p70
        %p370 = pneg %p94
        %p371 = pneg %p91
        %p372 = pneg %p115
        %p373 = pneg %p112
        %p374 = pneg %p136
        %p375 = pneg %p133
        %p376 = pneg %p157
        %p377 = pneg %p154
        %p378 = pneg %p178
        %p379 = pneg %p175
        %p380 = pneg %p199
        %p381 = pneg %p196
        %p382 = pneg %p220
        %p383 = pneg %p217
        %p384 = pneg %p241
        %p385 = pneg %p238
        %p386 = pneg %p267
        %p387 = pneg %p264
        %s388 = smul.u32 16, %s26
        %p389 = scmp.lt.s32.totalorder %s388, 31
        %s390 = scalar_select %p389, %s388, 31
        %s391 = smul.addr %s390, 8
        %s392 = scalar_lea.vmem %s10, %s391
        %p393 = pneg %p293
        %p394 = pneg %p290
        %s395 = sand.u32 %s280, 1
        %s396 = scalar_lea.sflag [#allocation3], %s395
        %s397 = sand.u32 %s280, 1
        %s398 = scalar_lea.vmem [#allocation2], %s397
        %s399 = smul.u32 16, %s26
        %p400 = scmp.lt.s32.totalorder %s399, 31
        %s401 = scalar_select %p400, %s399, 31
        %s402 = smul.addr %s401, 8
        %s403 = scalar_lea.vmem %s0, %s402
        %s404 = smul.u32 16, %s26
        %p405 = scmp.lt.s32.totalorder %s26, 1
        %s406 = scalar_select %p405, %s26, 1
        %s407 = scalar_lea.vmem %s1, %s406
        %s408 = smul.u32 16, %s26
        %p409 = scmp.lt.s32.totalorder %s408, 31
        %s410 = scalar_select %p409, %s408, 31
        %s411 = smul.addr %s410, 8
        %s412 = scalar_lea.vmem %s10, %s411
        %s413 = smul.u32 16, %s26
        %v414 = vld [vmem:[%s403] sm:$0xff]
        %v415 = vld [vmem:[%s403 + $0x8] sm:$0xff]
        %v416 = vld [vmem:[%s403 + $0x10] sm:$0xff]
        %v417 = vld [vmem:[%s403 + $0x18] sm:$0xff]
        %v418 = vld [vmem:[%s403 + $0x20] sm:$0xff]
        %v419 = vld [vmem:[%s403 + $0x28] sm:$0xff]
        %v420 = vld [vmem:[%s403 + $0x30] sm:$0xff]
        %v421 = vld [vmem:[%s403 + $0x38] sm:$0xff]
        %v422 = vld [vmem:[%s403 + $0x40] sm:$0xff]
        %v423 = vld [vmem:[%s403 + $0x48] sm:$0xff]
        %v424 = vld [vmem:[%s403 + $0x50] sm:$0xff]
        %v425 = vld [vmem:[%s403 + $0x58] sm:$0xff]
        %v426 = vld [vmem:[%s403 + $0x60] sm:$0xff]
        %v427 = vld [vmem:[%s403 + $0x68] sm:$0xff]
        %v428 = vld [vmem:[%s403 + $0x70] sm:$0xff]
        %v429 = vld [vmem:[%s403 + $0x78] sm:$0xff]
        %430 = vxpose.xlu0.b32.start [1/16] %v414, 128
        %431 = vxpose.xlu0.b32.cont [2/16] %v415, 128
        %432 = vxpose.xlu0.b32.cont [3/16] %v416, 128
        %433 = vxpose.xlu0.b32.cont [4/16] %v417, 128
        %434 = vxpose.xlu0.b32.cont [5/16] %v418, 128
        %435 = vxpose.xlu0.b32.cont [6/16] %v419, 128
        %436 = vxpose.xlu0.b32.cont [7/16] %v420, 128
        %437 = vxpose.xlu0.b32.cont [8/16] %v421, 128
        %438 = vxpose.xlu0.b32.cont [9/16] %v422, 128
        %439 = vxpose.xlu0.b32.cont [10/16] %v423, 128
        %440 = vxpose.xlu0.b32.cont [11/16] %v424, 128
        %441 = vxpose.xlu0.b32.cont [12/16] %v425, 128
        %442 = vxpose.xlu0.b32.cont [13/16] %v426, 128
        %443 = vxpose.xlu0.b32.cont [14/16] %v427, 128
        %444 = vxpose.xlu0.b32.cont [15/16] %v428, 128
        %445 = vxpose.xlu0.b32.end [16/16] %v429, 128
        %v446 = vpop.trf.xlu0
        %v447 = vpop.trf.xlu0
        %v448 = vpop.trf.xlu0
        %v449 = vpop.trf.xlu0
        %v450 = vpop.trf.xlu0
        %v451 = vpop.trf.xlu0
        %v452 = vpop.trf.xlu0
        %v453 = vpop.trf.xlu0
        %v454 = vpop.trf.xlu0
        %v455 = vpop.trf.xlu0
        %v456 = vpop.trf.xlu0
        %v457 = vpop.trf.xlu0
        %v458 = vpop.trf.xlu0
        %v459 = vpop.trf.xlu0
        %v460 = vpop.trf.xlu0
        %v461 = vpop.trf.xlu0
        %v462 = vld [vmem:[%s2] sm:$0xff]
        %v463 = vld [vmem:[%s2 + $0x8] sm:$0xff]
        %v464 = vld [vmem:[%s2 + $0x10] sm:$0xff]
        %v465 = vld [vmem:[%s2 + $0x18] sm:$0xff]
        %v466 = vld [vmem:[%s3] sm:$0xff]
        %v467 = vld [vmem:[%s3 + $0x8] sm:$0xff]
        %v468 = vld [vmem:[%s3 + $0x10] sm:$0xff]
        %v469 = vld [vmem:[%s3 + $0x18] sm:$0xff]
        %471 = vset.pattern.permute.xlu0 0
        %472 = vperm.xlu0 %471, %v466
        %v473 = vpop.permute.xlu0 %472
        %476 = vset.pattern.permute.xlu0 0
        %477 = vperm.xlu0 %476, %v467
        %v478 = vpop.permute.xlu0 %477
        %481 = vset.pattern.permute.xlu0 0
        %482 = vperm.xlu0 %481, %v468
        %v483 = vpop.permute.xlu0 %482
        %486 = vset.pattern.permute.xlu0 0
        %487 = vperm.xlu0 %486, %v469
        %v488 = vpop.permute.xlu0 %487
        %vm490 = vcmask 130048
        %v492 = vsel %vm490, %v462, 0
        %v495 = vsel %vm490, %v463, 0
        %v498 = vsel %vm490, %v464, 0
        %v501 = vsel %vm490, %v465, 0
        %503 = vmatpush.msra.mxu0 0.0
        %504 = vmatpush.msra.mxu0 0.0
        %505 = vmatpush.msra.mxu0 0.0
        %506 = vmatpush.msra.mxu0 0.0
        %507 = vmatpush.msra.mxu0 0.0
        %508 = vmatpush.msra.mxu0 0.0
        %509 = vmatpush.msra.mxu0 0.0
        %510 = vmatpush.msra.mxu0 0.0
        %511 = vmatpush.msra.mxu0 0.0
        %512 = vmatpush.msra.mxu0 0.0
        %513 = vmatpush.msra.mxu0 0.0
        %514 = vmatpush.msra.mxu0 0.0
        %515 = vmatpush.msra.mxu0 0.0
        %516 = vmatpush.msra.mxu0 0.0
        %517 = vmatpush.msra.mxu0 %v447
        %518 = vmatpush.msra.mxu0 %v446
        %519 = vmatmul.f32.gmra.mxu0 %v492
        %v520 = vpop.f32.mrf.mxu0
        %v521 = vadd.f32 %v473, %v520
        %522 = vmatmul.f32.gmra.mxu0 %v495
        %v523 = vpop.f32.mrf.mxu0
        %v524 = vadd.f32 %v478, %v523
        %525 = vmatmul.f32.gmra.mxu0 %v498
        %v526 = vpop.f32.mrf.mxu0
        %v527 = vadd.f32 %v483, %v526
        %528 = vmatmul.f32.gmra.mxu0 %v501
        %v529 = vpop.f32.mrf.mxu0
        %v530 = vadd.f32 %v488, %v529
        %531 = vdwg.mxu0
        %v532 = vmax.f32 %v521, 0.0
        %v533 = vmax.f32 %v524, 0.0
        %v534 = vmax.f32 %v527, 0.0
        %v535 = vmax.f32 %v530, 0.0
        %v536 = vld [vmem:[%s4] sm:$0xff]
        %v537 = vld [vmem:[%s4 + $0x8] sm:$0xff]
        %v538 = vld [vmem:[%s4 + $0x10] sm:$0xff]
        %v539 = vld [vmem:[%s5] sm:$0xff]
        %v540 = vld [vmem:[%s5 + $0x8] sm:$0xff]
        %v541 = vld [vmem:[%s5 + $0x10] sm:$0xff]
        %543 = vset.pattern.permute.xlu0 0
        %544 = vperm.xlu0 %543, %v539
        %v545 = vpop.permute.xlu0 %544
        %548 = vset.pattern.permute.xlu0 0
        %549 = vperm.xlu0 %548, %v540
        %v550 = vpop.permute.xlu0 %549
        %553 = vset.pattern.permute.xlu0 0
        %554 = vperm.xlu0 %553, %v541
        %v555 = vpop.permute.xlu0 %554
        %vm557 = vcmask 261120
        %v559 = vsel %vm557, %v536, 0
        %v562 = vsel %vm557, %v537, 0
        %v565 = vsel %vm557, %v538, 0
        %567 = vmatpush.msra.mxu0 0.0
        %568 = vmatpush.msra.mxu0 0.0
        %569 = vmatpush.msra.mxu0 0.0
        %570 = vmatpush.msra.mxu0 0.0
        %571 = vmatpush.msra.mxu0 0.0
        %572 = vmatpush.msra.mxu0 0.0
        %573 = vmatpush.msra.mxu0 0.0
        %574 = vmatpush.msra.mxu0 0.0
        %575 = vmatpush.msra.mxu0 0.0
        %576 = vmatpush.msra.mxu0 0.0
        %577 = vmatpush.msra.mxu0 0.0
        %578 = vmatpush.msra.mxu0 0.0
        %579 = vmatpush.msra.mxu0 %v535
        %580 = vmatpush.msra.mxu0 %v534
        %581 = vmatpush.msra.mxu0 %v533
        %582 = vmatpush.msra.mxu0 %v532
        %583 = vmatmul.f32.gmra.mxu0 %v559
        %v584 = vpop.f32.mrf.mxu0
        %v585 = vadd.f32 %v545, %v584
        %586 = vmatmul.f32.gmra.mxu0 %v562
        %v587 = vpop.f32.mrf.mxu0
        %v588 = vadd.f32 %v550, %v587
        %589 = vmatmul.f32.gmra.mxu0 %v565
        %v590 = vpop.f32.mrf.mxu0
        %v591 = vadd.f32 %v555, %v590
        %592 = vdwg.mxu0
        %v593 = vld [vmem:[%s8] sm:$0xff]
        %595 = vset.pattern.permute.xlu0 0
        %596 = vperm.xlu0 %595, %v593
        %v597 = vpop.permute.xlu0 %596
        %v599 = vmul.f32 %v591, %v597
        %v600 = vtanh.pop %v599
        %v601 = vld [vmem:[%s7] sm:$0xff]
        %603 = vset.pattern.permute.xlu0 0
        %604 = vperm.xlu0 %603, %v601
        %v605 = vpop.permute.xlu0 %604
        %v607 = vmul.f32 %v600, %v605
        %v608 = vrot.slane %v607, 4
        %v609 = vadd.f32 %v607, %v608
        %v610 = vrot.slane %v609, 2
        %v611 = vadd.f32 %v609, %v610
        %v612 = vrot.slane %v611, 1
        %v613 = vadd.f32 %v611, %v612
        %v614 = vmul.f32 %v607, 1.442695
        %v615 = vpow.pop %v614
        %v616 = vld [vmem:[%s6] sm:$0xff]
        %v617 = vld [vmem:[%s6 + $0x8] sm:$0xff]
        %v618 = vld [vmem:[%s9] sm:$0xff]
        %v619 = vld [vmem:[%s9 + $0x8] sm:$0xff]
        %621 = vset.pattern.permute.xlu0 0
        %622 = vperm.xlu0 %621, %v618
        %v623 = vpop.permute.xlu0 %622
        %626 = vset.pattern.permute.xlu0 0
        %627 = vperm.xlu0 %626, %v619
        %v628 = vpop.permute.xlu0 %627
        %vm630 = vcmask 64512
        %v632 = vsel %vm630, %v616, 0
        %v635 = vsel %vm630, %v617, 0
        %637 = vmatpush.msra.mxu0 0.0
        %638 = vmatpush.msra.mxu0 0.0
        %639 = vmatpush.msra.mxu0 0.0
        %640 = vmatpush.msra.mxu0 0.0
        %641 = vmatpush.msra.mxu0 0.0
        %642 = vmatpush.msra.mxu0 0.0
        %643 = vmatpush.msra.mxu0 0.0
        %644 = vmatpush.msra.mxu0 0.0
        %645 = vmatpush.msra.mxu0 0.0
        %646 = vmatpush.msra.mxu0 0.0
        %647 = vmatpush.msra.mxu0 0.0
        %648 = vmatpush.msra.mxu0 0.0
        %649 = vmatpush.msra.mxu0 0.0
        %650 = vmatpush.msra.mxu0 0.0
        %651 = vmatpush.msra.mxu0 0.0
        %652 = vmatpush.msra.mxu0 %v615
        %653 = vmatmul.f32.gmra.mxu0 %v632
        %v654 = vpop.f32.mrf.mxu0
        %v655 = vadd.f32 %v623, %v654
        %656 = vmatmul.f32.gmra.mxu0 %v635
        %v657 = vpop.f32.mrf.mxu0
        %v658 = vadd.f32 %v628, %v657
        %659 = vdwg.mxu0
        %v660 = vadd.f32 %v446, %v585
        %v661 = vadd.f32 %v447, %v588
        %v662 = vmul.f32 %v660, %v655
        %v663 = vmul.f32 %v661, %v658
        %v664 = vld [vmem:[%s407] sm:$0x1]
        %v665 = vadd.f32 %v664, %v613
        %666 = vst [vmem:[%s398] sm:$0x1] %v665
        %667 = vxpose.xlu0.b32.start [1/16] %v662, 128
        %668 = vxpose.xlu0.b32.cont [2/16] %v663, 128
        %669 = vxpose.xlu0.b32.cont [3/16] 0.0, 128
        %670 = vxpose.xlu0.b32.cont [4/16] 0.0, 128
        %671 = vxpose.xlu0.b32.cont [5/16] 0.0, 128
        %672 = vxpose.xlu0.b32.cont [6/16] 0.0, 128
        %673 = vxpose.xlu0.b32.cont [7/16] 0.0, 128
        %674 = vxpose.xlu0.b32.cont [8/16] 0.0, 128
        %675 = vxpose.xlu0.b32.cont [9/16] 0.0, 128
        %676 = vxpose.xlu0.b32.cont [10/16] 0.0, 128
        %677 = vxpose.xlu0.b32.cont [11/16] 0.0, 128
        %678 = vxpose.xlu0.b32.cont [12/16] 0.0, 128
        %679 = vxpose.xlu0.b32.cont [13/16] 0.0, 128
        %680 = vxpose.xlu0.b32.cont [14/16] 0.0, 128
        %681 = vxpose.xlu0.b32.cont [15/16] 0.0, 128
        %682 = vxpose.xlu0.b32.end [16/16] 0.0, 128
        %v683 = vpop.trf.xlu0
        %v684 = vpop.trf.xlu0
        %v685 = vpop.trf.xlu0
        %v686 = vpop.trf.xlu0
        %v687 = vpop.trf.xlu0
        %v688 = vpop.trf.xlu0
        %v689 = vpop.trf.xlu0
        %v690 = vpop.trf.xlu0
        %v691 = vpop.trf.xlu0
        %v692 = vpop.trf.xlu0
        %v693 = vpop.trf.xlu0
        %v694 = vpop.trf.xlu0
        %v695 = vpop.trf.xlu0
        %v696 = vpop.trf.xlu0
        %v697 = vpop.trf.xlu0
        %v698 = vpop.trf.xlu0
        %699 = vst.msk [vmem:[%s412] sm:$0xff] %vm490, %v683
        %700 = vst.msk [vmem:[%s412 + $0x8] sm:$0xff] %vm490, %v684
        %701 = vst.msk [vmem:[%s412 + $0x10] sm:$0xff] %vm490, %v685
        %702 = vst.msk [vmem:[%s412 + $0x18] sm:$0xff] %vm490, %v686
        %703 = vst.msk [vmem:[%s412 + $0x20] sm:$0xff] %vm490, %v687
        %704 = vst.msk [vmem:[%s412 + $0x28] sm:$0xff] %vm490, %v688
        %705 = vst.msk [vmem:[%s412 + $0x30] sm:$0xff] %vm490, %v689
        %706 = vst.msk [vmem:[%s412 + $0x38] sm:$0xff] %vm490, %v690
        %707 = vst.msk [vmem:[%s412 + $0x40] sm:$0xff] %vm490, %v691
        %708 = vst.msk [vmem:[%s412 + $0x48] sm:$0xff] %vm490, %v692
        %709 = vst.msk [vmem:[%s412 + $0x50] sm:$0xff] %vm490, %v693
        %710 = vst.msk [vmem:[%s412 + $0x58] sm:$0xff] %vm490, %v694
        %711 = vst.msk [vmem:[%s412 + $0x60] sm:$0xff] %vm490, %v695
        %712 = vst.msk [vmem:[%s412 + $0x68] sm:$0xff] %vm490, %v696
        %713 = vst.msk [vmem:[%s412 + $0x70] sm:$0xff] %vm490, %v697
        %714 = vst.msk [vmem:[%s412 + $0x78] sm:$0xff] %vm490, %v698
        %s715 = smul.u32 16, %s26
        %p716 = scmp.lt.s32.totalorder %s715, 31
        %s717 = scalar_select %p716, %s715, 31
        %s718 = smul.addr %s717, 8
        %s719 = scalar_lea.vmem %s10, %s718
        %s720 = sand.u32 %s280, 1
        %s721 = scalar_lea.sflag [#allocation3], %s720
        %s722 = sand.u32 %s280, 1
        %s723 = scalar_lea.vmem [#allocation2], %s722
        // Predicated region
        $region61: #{_coupling_apply.1} parent=59 // pred_check
          %p724 = pneg %p264
        $region62: #{_coupling_apply.1} parent=59 // pred_check_branch
          %726 = sbr.rel (%p724) target = $region64
        $region63: #{_coupling_apply.1} parent=59 // pred_region
          %s727 = smul.u32 16, %s26
        $region64: #{_coupling_apply.1} parent=59 // pred_fallthru
          _
        // Predicated region
        $region65: #{_coupling_apply.1} parent=59 // pred_check
          %p728 = pneg %p290
        $region66: #{_coupling_apply.1} parent=59 // pred_check_branch
          %730 = sbr.rel (%p728) target = $region68
        $region67: #{_coupling_apply.1} parent=59 // pred_region
          %732 = vsyncadd %s721, 0
          %s733 = scalar_lea.hbm %s11, %s26
          %s735 = sshll.u32 %s723, 4
          %s736 = int_to_ptr.vmem [resolvable:$true] %s735
          %s737 = sshll.u32 %s733, 4
          %s738 = int_to_ptr.hbm [resolvable:$true] %s737
          %740 = dma.vmem_to_hbm [thread:$0]  %s736, 16, %s738, %s721
        $region68: #{_coupling_apply.1} parent=59 // pred_fallthru
          _
      $region60: #{_coupling_apply.1} parent=5 // pred_fallthru
        _
      %p741 = scmp.le.s32.totalorder 2, %s21
      // Predicated region
      $region69: #{_coupling_apply.1} parent=5 // pred_check
        %p742 = pneg %p741
      $region70: #{_coupling_apply.1} parent=5 // pred_check_branch
        %744 = sbr.rel (%p742) target = $region72
      $region71: #{_coupling_apply.1} parent=5 // pred_region
        %s745 = ssub.s32 %s21, 2
        // Predicated region
        $region73: #{_coupling_apply.1} parent=71 // pred_check
          %p746 = pneg %p270
        $region74: #{_coupling_apply.1} parent=71 // pred_check_branch
          %748 = sbr.rel (%p746) target = $region76
        $region75: #{_coupling_apply.1} parent=71 // pred_region
          %s749 = smul.u32 16, %s27
          %p750 = scmp.lt.s32.totalorder %s749, 31
          %s751 = scalar_select %p750, %s749, 31
          %s752 = smul.addr %s751, 8
          %s753 = scalar_lea.vmem %s10, %s752
        $region76: #{_coupling_apply.1} parent=71 // pred_fallthru
          _
        // Predicated region
        $region77: #{_coupling_apply.1} parent=71 // pred_check
          %p754 = pneg %p296
        $region78: #{_coupling_apply.1} parent=71 // pred_check_branch
          %756 = sbr.rel (%p754) target = $region80
        $region79: #{_coupling_apply.1} parent=71 // pred_region
          %s757 = sand.u32 %s281, 1
          %s758 = scalar_lea.sflag [#allocation3], %s757
          %s759 = sand.u32 %s281, 1
          %s760 = scalar_lea.vmem [#allocation2], %s759
          %762 = dma.done %s758, 16
        $region80: #{_coupling_apply.1} parent=71 // pred_fallthru
          _
      $region72: #{_coupling_apply.1} parent=5 // pred_fallthru
        _
    $region6: #{_coupling_apply.1} parent=1 // loop_footer
      %s25 = sadd.s32 1, %s21
    $region7: #{_coupling_apply.1} parent=1 // loop_footer_branch
      %20 = sbr.rel target = $region3
    $region8: #{_coupling_apply.1} parent=1 // loop_exit
      _
    %763 = vsyncpa [#allocation3], 1
    %s764 = scalar_lea.sflag [#allocation3], 1
    %765 = vsyncpa %s764, 1

</llo_original>
